<compile_context>
chip_gen: v6e
topology: v6e:2x2x1
jax: 0.10.0
libtpu: 0.0.40
codegen_flags: <defaults>
</compile_context>

<pallas_src>
import functools
import math

import jax
import jax.numpy as jnp
from jax import lax
from jax.experimental import pallas as pl
from jax.experimental.pallas import tpu as pltpu

# Small, module-consistent hyperparameters.
N_EMBED = 32     # n_embed
HEAD_SIZE = 16   # head_size
BLOCK_SIZE = 8   # block_size (== time/seq length T)
BATCH = 2

_NEG_BIG = 1e30  # finite "minus infinity" magnitude for masking


def _attention_head_kernel(x_ref, w_ref, bias_ref, o_ref, *, n_embed):
    # x_ref: (B*T, E) slab, w_ref: (E, 3H) fused K|Q|V weights,
    # bias_ref: (B*T, B*T) additive mask (0 keep / -1e30 drop), o_ref: (B*T, H).
    x = x_ref[...]                                    # (B*T, E)
    w = w_ref[...]                                    # (E, 3H)
    H = w.shape[1] // 3

    # One fused projection matmul instead of three.
    kqv = jnp.dot(x, w, preferred_element_type=jnp.float32)      # (B*T, 3H)
    k = kqv[:, :H]
    # Fold the score scale into q (smaller than the (B*T, B*T) score matrix).
    q = kqv[:, H:2 * H] * jnp.float32(n_embed ** (-0.5))
    v = kqv[:, 2 * H:]

    # Scores without an explicit k.T: contract on the head dim of both operands.
    wei = lax.dot_general(
        q, k,
        dimension_numbers=(((1,), (1,)), ((), ())),
        preferred_element_type=jnp.float32,
    )                                                 # (B*T, B*T)

    # Block-diagonal causal mask as a single additive bias (precomputed).
    masked = wei + bias_ref[...]

    # Softmax over the *query* axis (dim=1 of the (B,T,T) reference) == axis 0.
    # Cross-batch / masked entries underflow to exactly 0, so normalizing over
    # the full column equals the per-batch normalization of the reference.
    m = jnp.max(masked, axis=0, keepdims=True)
    e = jnp.exp(masked - m)
    s = jnp.sum(e, axis=0, keepdims=True)
    attn = e * pl.reciprocal(s, approx=True)          # EUP reciprocal, VALU-free

    o_ref[...] = jnp.dot(attn, v, preferred_element_type=jnp.float32)  # (B*T, H)


def attention_head(x, wk, wq, wv):
    """x: (B, T, E) f32; wk/wq/wv: (E, H) f32 -> (B, T, H) f32."""
    B, T, E = x.shape
    H = wk.shape[1]
    BT = B * T

    # Fuse the three projection weights into one (E, 3H) operand (K | Q | V).
    w_kqv = jnp.concatenate([wk, wq, wv], axis=1)
    # Flatten batch/time into one sublane-dense slab (free reshape).
    x2 = x.reshape(BT, E)

    # Block-diagonal causal additive mask (analogue of the module's `tril`
    # buffer): keep (q_idx >= k_idx) within the same batch block, else -1e30.
    row = jnp.arange(BT, dtype=jnp.int32)[:, None]
    col = jnp.arange(BT, dtype=jnp.int32)[None, :]
    keep = ((row // T) == (col // T)) & (col <= row)
    mask_bias = jnp.where(keep, 0.0, -_NEG_BIG).astype(jnp.float32)

    out = pl.pallas_call(
        functools.partial(_attention_head_kernel, n_embed=E),
        out_shape=jax.ShapeDtypeStruct((BT, H), jnp.float32),
        # No grid: single program, whole arrays resident in VMEM.
        in_specs=[
            pl.BlockSpec((BT, E), lambda: (0, 0)),
            pl.BlockSpec((E, 3 * H), lambda: (0, 0)),
            pl.BlockSpec((BT, BT), lambda: (0, 0)),
        ],
        out_specs=pl.BlockSpec((BT, H), lambda: (0, 0)),
        compiler_params=pltpu.CompilerParams(
            vmem_limit_bytes=16 * 1024 * 1024,
        ),
    )(x2, w_kqv, mask_bias)
    # TODO(synk): for multi-head use, pack heads along the last dim so the
    # output is lane-dense (>=128 lanes); a single H=16 head cannot be.
    return out.reshape(B, T, H)


def _reference(x, wk, wq, wv):
    # Pure-JAX reference mirroring the PyTorch forward exactly.
    B, T, E = x.shape
    k = x @ wk
    q = x @ wq
    v = x @ wv
    wei = jnp.einsum("bth,bsh->bts", q, k) * (E ** -0.5)
    row = jnp.arange(T)[:, None]
    col = jnp.arange(T)[None, :]
    masked = jnp.where(col <= row, wei, -jnp.inf)
    attn = jax.nn.softmax(masked, axis=1)  # dim=1, as in the PyTorch module
    return attn @ v


if __name__ == "__main__":
    key = jax.random.PRNGKey(0)
    kx, kk, kq, kv = jax.random.split(key, 4)

    x = jax.random.normal(kx, (BATCH, BLOCK_SIZE, N_EMBED), dtype=jnp.float32)
    # Deterministic "Linear(n_embed, head_size, bias=False)" weights, stored (E, H).
    bound = 1.0 / math.sqrt(N_EMBED)
    wk = jax.random.uniform(kk, (N_EMBED, HEAD_SIZE), jnp.float32, -bound, bound)
    wq = jax.random.uniform(kq, (N_EMBED, HEAD_SIZE), jnp.float32, -bound, bound)
    wv = jax.random.uniform(kv, (N_EMBED, HEAD_SIZE), jnp.float32, -bound, bound)

    out = attention_head(x, wk, wq, wv)
    out = jax.block_until_ready(out)

    ref = _reference(x, wk, wq, wv)
    assert out.shape == (BATCH, BLOCK_SIZE, HEAD_SIZE)
    # Tolerance loosened slightly because of the approximate EUP reciprocal.
    assert jnp.allclose(out, ref, atol=2e-3, rtol=2e-3), "mismatch vs reference"

    print("KERNEL_OK")
</pallas_src>

<mosaic_0001>
module attributes {stable_mosaic.version = 11 : i64} {
  func.func @_attention_head_kernel(%arg0: memref<16x32xf32, #tpu.memory_space<vmem>>, %arg1: memref<32x48xf32, #tpu.memory_space<vmem>>, %arg2: memref<16x16xf32, #tpu.memory_space<vmem>>, %arg3: memref<16x16xf32, #tpu.memory_space<vmem>>) attributes {dimension_semantics = [], scalar_prefetch = 0 : i64, scratch_operands = 0 : i64, tpu.core_type = #tpu.core_type<tc>} {
    %c0 = arith.constant 0 : index
    %c0_0 = arith.constant 0 : index
    %0 = vector.load %arg0[%c0, %c0_0] : memref<16x32xf32, #tpu.memory_space<vmem>>, vector<16x32xf32>
    %c0_1 = arith.constant 0 : index
    %c0_2 = arith.constant 0 : index
    %1 = vector.load %arg1[%c0_1, %c0_2] : memref<32x48xf32, #tpu.memory_space<vmem>>, vector<32x48xf32>
    %cst = arith.constant dense<0.000000e+00> : vector<16x48xf32>
    %2 = tpu.matmul %0, %1, %cst {dimension_numbers = #tpu.dot_dimension_numbers<[1], [0], [0], [1], [0, 0, 1, 1], [], []>} : vector<16x32xf32>, vector<32x48xf32>, vector<16x48xf32> -> vector<16x48xf32>
    %3 = vector.extract_strided_slice %2 {offsets = [0, 0], sizes = [16, 16], strides = [1, 1]} : vector<16x48xf32> to vector<16x16xf32>
    %4 = vector.extract_strided_slice %2 {offsets = [0, 16], sizes = [16, 16], strides = [1, 1]} : vector<16x48xf32> to vector<16x16xf32>
    %cst_3 = arith.constant 0.176776692 : f32
    %5 = vector.broadcast %cst_3 : f32 to vector<16x16xf32>
    %6 = arith.mulf %4, %5 : vector<16x16xf32>
    %7 = vector.extract_strided_slice %2 {offsets = [0, 32], sizes = [16, 16], strides = [1, 1]} : vector<16x48xf32> to vector<16x16xf32>
    %cst_4 = arith.constant dense<0.000000e+00> : vector<16x16xf32>
    %8 = tpu.matmul %6, %3, %cst_4 {dimension_numbers = #tpu.dot_dimension_numbers<[1], [1], [0], [0], [0, 0, 1, 0], [], []>} : vector<16x16xf32>, vector<16x16xf32>, vector<16x16xf32> -> vector<16x16xf32>
    %c0_5 = arith.constant 0 : index
    %c0_6 = arith.constant 0 : index
    %9 = vector.load %arg2[%c0_5, %c0_6] : memref<16x16xf32, #tpu.memory_space<vmem>>, vector<16x16xf32>
    %10 = arith.addf %8, %9 : vector<16x16xf32>
    %cst_7 = arith.constant dense<0xFF800000> : vector<16xf32>
    %11 = vector.multi_reduction <maximumf>, %10, %cst_7 [0] : vector<16x16xf32> to vector<16xf32>
    %12 = vector.shape_cast %11 : vector<16xf32> to vector<1x16xf32>
    %13 = vector.broadcast %12 : vector<1x16xf32> to vector<16x16xf32>
    %14 = arith.subf %10, %13 : vector<16x16xf32>
    %15 = math.exp %14 : vector<16x16xf32>
    %cst_8 = arith.constant dense<0.000000e+00> : vector<16xf32>
    %16 = vector.multi_reduction <add>, %15, %cst_8 [0] : vector<16x16xf32> to vector<16xf32>
    %17 = vector.shape_cast %16 : vector<16xf32> to vector<1x16xf32>
    %18 = tpu.reciprocal %17 {approx = true} : vector<1x16xf32> -> vector<1x16xf32>
    %19 = vector.broadcast %18 : vector<1x16xf32> to vector<16x16xf32>
    %20 = arith.mulf %15, %19 : vector<16x16xf32>
    %cst_9 = arith.constant dense<0.000000e+00> : vector<16x16xf32>
    %21 = tpu.matmul %20, %7, %cst_9 {dimension_numbers = #tpu.dot_dimension_numbers<[1], [0], [0], [1], [0, 0, 1, 1], [], []>} : vector<16x16xf32>, vector<16x16xf32>, vector<16x16xf32> -> vector<16x16xf32>
    %c0_10 = arith.constant 0 : index
    %c0_11 = arith.constant 0 : index
    %22 = vector.load %arg3[%c0_10, %c0_11] : memref<16x16xf32, #tpu.memory_space<vmem>>, vector<16x16xf32>
    tpu.vector_store %arg3[%c0_10, %c0_11], %21 {strides = array<i32>} : memref<16x16xf32, #tpu.memory_space<vmem>>, vector<16x16xf32>,
    return
  }
}

</mosaic_0001>

<llo_original>
// kernel: tpu_custom_call.1
$region0: #{tpu_custom_call.1}
  #allocation0 [shape = 'u32[]', space=smem, size = 0x4, offset = 0x4, fixed_abs, tag = 'smem constant byte address 0x4 - core index']
  #allocation1 [shape = 'u32[144,128]{1,0:T(1,128)}', space=vmem, size = 0x12000, scoped, tag = 'internal scratch']
  %s0 = inlined_call_operand.hbm [shape: f32[16,32], index: 0, kind: input, shape index: {}]
  %s1 = inlined_call_operand.hbm [shape: f32[32,48], index: 1, kind: input, shape index: {}]
  %s2 = inlined_call_operand.hbm [shape: f32[16,16], index: 2, kind: input, shape index: {}]
  %s3 = inlined_call_operand.hbm [shape: f32[16,16], index: 3, kind: output, shape index: {}]
  %s4 = sld [smem:[#allocation0]]
  $region34: #{tpu_custom_call.1} parent=0
    _
  %s6 = ssub.s32 1, %s4
  %s7 = scalar_select 0, %s6, %s4
  $region1: #{tpu_custom_call.1} parent=0
    #allocation2 [shape = 'u8[8192]{0}', space=vmem, size = 0x2000, scoped, tag = 'input window, operand 0, single buffered']
    #allocation3 [shape = 's32[1]{0}', space=sflag, size = 0x4, scoped, tag = 'scoped memory for tpu_custom_call.1']
    #allocation4 [shape = 's32[1]{0}', space=sflag, size = 0x4, scoped, tag = 'scoped memory for tpu_custom_call.1']
    #allocation5 [shape = 'u8[16384]{0}', space=vmem, size = 0x4000, scoped, tag = 'input window, operand 1, single buffered']
    #allocation6 [shape = 's32[1]{0}', space=sflag, size = 0x4, scoped, tag = 'scoped memory for tpu_custom_call.1']
    #allocation7 [shape = 'u8[8192]{0}', space=vmem, size = 0x2000, scoped, tag = 'input window, operand 2, single buffered']
    #allocation8 [shape = 'u8[8192]{0}', space=vmem, size = 0x2000, scoped, tag = 'output window, operand 0, single buffered']
    %8 = vsyncpa [#allocation3], 0
    %9 = vsyncpa [#allocation6], 0
    %10 = vsyncpa [#allocation4], 0
    // Predicated region
    $region2: #{tpu_custom_call.1} parent=1 // pred_check
      _
    $region3: #{tpu_custom_call.1} parent=1 // pred_check_branch
      %12 = sbr.rel (0) target = $region5
    $region4: #{tpu_custom_call.1} parent=1 // pred_region
      %s14 = ssub.s32 256, 256
      %15 = vsyncadd [#allocation3], %s14
      %s16 = sshll.u32 [#allocation2], 4
      %s17 = int_to_ptr.vmem [resolvable:$true] %s16
      %22 = dma.hbm_to_vmem [thread:$0]  %s0, 256, %s17, [#allocation3], 128, 128, 8
    $region5: #{tpu_custom_call.1} parent=1 // pred_fallthru
      _
    // Predicated region
    $region6: #{tpu_custom_call.1} parent=1 // pred_check
      _
    $region7: #{tpu_custom_call.1} parent=1 // pred_check_branch
      %24 = sbr.rel (0) target = $region9
    $region8: #{tpu_custom_call.1} parent=1 // pred_region
      %s26 = ssub.s32 512, 512
      %27 = vsyncadd [#allocation6], %s26
      %s28 = sshll.u32 [#allocation5], 4
      %s29 = int_to_ptr.vmem [resolvable:$true] %s28
      %34 = dma.hbm_to_vmem [thread:$0]  %s1, 512, %s29, [#allocation6], 128, 128, 8
    $region9: #{tpu_custom_call.1} parent=1 // pred_fallthru
      _
    // Predicated region
    $region10: #{tpu_custom_call.1} parent=1 // pred_check
      _
    $region11: #{tpu_custom_call.1} parent=1 // pred_check_branch
      %36 = sbr.rel (0) target = $region13
    $region12: #{tpu_custom_call.1} parent=1 // pred_region
      %s38 = ssub.s32 256, 256
      %39 = vsyncadd [#allocation6], %s38
      %s40 = sshll.u32 [#allocation7], 4
      %s41 = int_to_ptr.vmem [resolvable:$true] %s40
      %46 = dma.hbm_to_vmem [thread:$0]  %s2, 256, %s41, [#allocation6], 128, 128, 8
    $region13: #{tpu_custom_call.1} parent=1 // pred_fallthru
      _
    // Predicated region
    $region14: #{tpu_custom_call.1} parent=1 // pred_check
      _
    $region15: #{tpu_custom_call.1} parent=1 // pred_check_branch
      %48 = sbr.rel (0) target = $region17
    $region16: #{tpu_custom_call.1} parent=1 // pred_region
      %49 = dma.done [#allocation3], 256
    $region17: #{tpu_custom_call.1} parent=1 // pred_fallthru
      _
    // Predicated region
    $region18: #{tpu_custom_call.1} parent=1 // pred_check
      _
    $region19: #{tpu_custom_call.1} parent=1 // pred_check_branch
      %51 = sbr.rel (0) target = $region21
    $region20: #{tpu_custom_call.1} parent=1 // pred_region
      %52 = dma.done [#allocation6], 512
    $region21: #{tpu_custom_call.1} parent=1 // pred_fallthru
      _
    // Predicated region
    $region22: #{tpu_custom_call.1} parent=1 // pred_check
      _
    $region23: #{tpu_custom_call.1} parent=1 // pred_check_branch
      %54 = sbr.rel (0) target = $region25
    $region24: #{tpu_custom_call.1} parent=1 // pred_region
      %55 = dma.done [#allocation6], 256
    $region25: #{tpu_custom_call.1} parent=1 // pred_fallthru
      _
    %v56 = vld [vmem:[#allocation2] sm:$0xff]
    %v57 = vld [vmem:[#allocation2 + $0x8] sm:$0xff]
    %v58 = vld [vmem:[#allocation5] sm:$0xff]
    %v59 = vld [vmem:[#allocation5 + $0x8] sm:$0xff]
    %v60 = vld [vmem:[#allocation5 + $0x10] sm:$0xff]
    %v61 = vld [vmem:[#allocation5 + $0x18] sm:$0xff]
    %vm62 = vcmask 261120
    %v64 = vsel %vm62, %v56, 0
    %v67 = vsel %vm62, %v57, 0
    %69 = vmatprep.subr.mxu0 0.0
    %70 = vmatpush1.msra.mxu0 0.0
    %71 = vmatprep.subr.mxu0 0.0
    %72 = vmatpush1.msra.mxu0 0.0
    %73 = vmatprep.subr.mxu0 0.0
    %74 = vmatpush1.msra.mxu0 0.0
    %75 = vmatprep.subr.mxu0 0.0
    %76 = vmatpush1.msra.mxu0 0.0
    %77 = vmatprep.subr.mxu0 0.0
    %78 = vmatpush1.msra.mxu0 0.0
    %79 = vmatprep.subr.mxu0 0.0
    %80 = vmatpush1.msra.mxu0 0.0
    %81 = vmatprep.subr.mxu0 0.0
    %82 = vmatpush1.msra.mxu0 0.0
    %83 = vmatprep.subr.mxu0 0.0
    %84 = vmatpush1.msra.mxu0 0.0
    %85 = vmatprep.subr.mxu0 0.0
    %86 = vmatpush1.msra.mxu0 0.0
    %87 = vmatprep.subr.mxu0 0.0
    %88 = vmatpush1.msra.mxu0 0.0
    %89 = vmatprep.subr.mxu0 0.0
    %90 = vmatpush1.msra.mxu0 0.0
    %91 = vmatprep.subr.mxu0 0.0
    %92 = vmatpush1.msra.mxu0 0.0
    %93 = vmatprep.subr.mxu0 0.0
    %94 = vmatpush1.msra.mxu0 %v61
    %95 = vmatprep.subr.mxu0 0.0
    %96 = vmatpush1.msra.mxu0 %v60
    %97 = vmatprep.subr.mxu0 0.0
    %98 = vmatpush1.msra.mxu0 %v59
    %99 = vmatprep.subr.mxu0 0.0
    %100 = vmatpush1.msra.mxu0 %v58
    %101 = vmatprep.subr.mxu0 0.0
    %102 = vmatpush2.msra.mxu0 0.0
    %103 = vmatprep.subr.mxu0 0.0
    %104 = vmatpush2.msra.mxu0 0.0
    %105 = vmatprep.subr.mxu0 0.0
    %106 = vmatpush2.msra.mxu0 0.0
    %107 = vmatprep.subr.mxu0 0.0
    %108 = vmatpush2.msra.mxu0 0.0
    %109 = vmatprep.subr.mxu0 0.0
    %110 = vmatpush2.msra.mxu0 0.0
    %111 = vmatprep.subr.mxu0 0.0
    %112 = vmatpush2.msra.mxu0 0.0
    %113 = vmatprep.subr.mxu0 0.0
    %114 = vmatpush2.msra.mxu0 0.0
    %115 = vmatprep.subr.mxu0 0.0
    %116 = vmatpush2.msra.mxu0 0.0
    %117 = vmatprep.subr.mxu0 0.0
    %118 = vmatpush2.msra.mxu0 0.0
    %119 = vmatprep.subr.mxu0 0.0
    %120 = vmatpush2.msra.mxu0 0.0
    %121 = vmatprep.subr.mxu0 0.0
    %122 = vmatpush2.msra.mxu0 0.0
    %123 = vmatprep.subr.mxu0 0.0
    %124 = vmatpush2.msra.mxu0 0.0
    %125 = vmatprep.subr.mxu0 0.0
    %126 = vmatpush2.msra.mxu0 0.0
    %127 = vmatprep.subr.mxu0 0.0
    %128 = vmatpush2.msra.mxu0 0.0
    %129 = vmatprep.subr.mxu0 0.0
    %130 = vmatpush2.msra.mxu0 0.0
    %131 = vmatprep.subr.mxu0 0.0
    %132 = vmatpush2.msra.mxu0 0.0
    %133 = vmatprep.mubr.f32.mxu0 0.0
    %134 = vmatmul.mubr.f32.gmra.mxu0 %v64
    %v135 = vpop.f32.mrf.mxu0
    %v136 = vadd.f32 0.0, %v135
    %v137 = vpop.f32.mrf.mxu0
    %138 = vmatprep.mubr.f32.mxu0 0.0
    %139 = vmatmul.mubr.f32.gmra.mxu0 %v67
    %v140 = vpop.f32.mrf.mxu0
    %v141 = vadd.f32 0.0, %v140
    %v142 = vpop.f32.mrf.mxu0
    %143 = vdwg.mxu0
    %v144 = vmul.f32 %v136, 0.17677669
    %v145 = vmul.f32 %v141, 0.17677669
    %v146 = vld [vmem:[#allocation7] sm:$0xff]
    %v147 = vld [vmem:[#allocation7 + $0x8] sm:$0xff]
    %150 = vrot.lane.b32.xlu0 %v144, 112
    %v151 = vpop.permute.xlu0 %150
    %152 = vrot.lane.b32.xlu0 %v145, 112
    %v153 = vpop.permute.xlu0 %152
    %vm154 = vcmask 130048
    %v155 = vsel %vm154, %v151, 0
    %v157 = vsel %vm154, %v153, 0
    %v160 = vsel %vm154, %v136, 0
    %v163 = vsel %vm154, %v141, 0
    %165 = vmatprep.subr.mxu0 0.0
    %166 = vmatpush1.xpose.msra.mxu0 0.0
    %167 = vmatprep.subr.mxu0 0.0
    %168 = vmatpush1.xpose.msra.mxu0 0.0
    %169 = vmatprep.subr.mxu0 0.0
    %170 = vmatpush1.xpose.msra.mxu0 0.0
    %171 = vmatprep.subr.mxu0 0.0
    %172 = vmatpush1.xpose.msra.mxu0 0.0
    %173 = vmatprep.subr.mxu0 0.0
    %174 = vmatpush1.xpose.msra.mxu0 0.0
    %175 = vmatprep.subr.mxu0 0.0
    %176 = vmatpush1.xpose.msra.mxu0 0.0
    %177 = vmatprep.subr.mxu0 0.0
    %178 = vmatpush1.xpose.msra.mxu0 0.0
    %179 = vmatprep.subr.mxu0 0.0
    %180 = vmatpush1.xpose.msra.mxu0 0.0
    %181 = vmatprep.subr.mxu0 0.0
    %182 = vmatpush1.xpose.msra.mxu0 0.0
    %183 = vmatprep.subr.mxu0 0.0
    %184 = vmatpush1.xpose.msra.mxu0 0.0
    %185 = vmatprep.subr.mxu0 0.0
    %186 = vmatpush1.xpose.msra.mxu0 0.0
    %187 = vmatprep.subr.mxu0 0.0
    %188 = vmatpush1.xpose.msra.mxu0 0.0
    %189 = vmatprep.subr.mxu0 0.0
    %190 = vmatpush1.xpose.msra.mxu0 0.0
    %191 = vmatprep.subr.mxu0 0.0
    %192 = vmatpush1.xpose.msra.mxu0 0.0
    %193 = vmatprep.subr.mxu0 0.0
    %194 = vmatpush1.xpose.msra.mxu0 %v163
    %195 = vmatprep.subr.mxu0 0.0
    %196 = vmatpush1.xpose.msra.mxu0 %v160
    %197 = vmatprep.subr.mxu0 0.0
    %198 = vmatpush2.xpose.msra.mxu0 0.0
    %199 = vmatprep.subr.mxu0 0.0
    %200 = vmatpush2.xpose.msra.mxu0 0.0
    %201 = vmatprep.subr.mxu0 0.0
    %202 = vmatpush2.xpose.msra.mxu0 0.0
    %203 = vmatprep.subr.mxu0 0.0
    %204 = vmatpush2.xpose.msra.mxu0 0.0
    %205 = vmatprep.subr.mxu0 0.0
    %206 = vmatpush2.xpose.msra.mxu0 0.0
    %207 = vmatprep.subr.mxu0 0.0
    %208 = vmatpush2.xpose.msra.mxu0 0.0
    %209 = vmatprep.subr.mxu0 0.0
    %210 = vmatpush2.xpose.msra.mxu0 0.0
    %211 = vmatprep.subr.mxu0 0.0
    %212 = vmatpush2.xpose.msra.mxu0 0.0
    %213 = vmatprep.subr.mxu0 0.0
    %214 = vmatpush2.xpose.msra.mxu0 0.0
    %215 = vmatprep.subr.mxu0 0.0
    %216 = vmatpush2.xpose.msra.mxu0 0.0
    %217 = vmatprep.subr.mxu0 0.0
    %218 = vmatpush2.xpose.msra.mxu0 0.0
    %219 = vmatprep.subr.mxu0 0.0
    %220 = vmatpush2.xpose.msra.mxu0 0.0
    %221 = vmatprep.subr.mxu0 0.0
    %222 = vmatpush2.xpose.msra.mxu0 0.0
    %223 = vmatprep.subr.mxu0 0.0
    %224 = vmatpush2.xpose.msra.mxu0 0.0
    %225 = vmatprep.subr.mxu0 0.0
    %226 = vmatpush2.xpose.msra.mxu0 0.0
    %227 = vmatprep.subr.mxu0 0.0
    %228 = vmatpush2.xpose.msra.mxu0 0.0
    %229 = vmatprep.mubr.f32.mxu0 0.0
    %230 = vmatmul.mubr.f32.gmra.mxu0 %v155
    %v231 = vpop.f32.mrf.mxu0
    %v232 = vadd.f32 %v146, %v231
    %v233 = vpop.f32.mrf.mxu0
    %234 = vmatprep.mubr.f32.mxu0 0.0
    %235 = vmatmul.mubr.f32.gmra.mxu0 %v157
    %v236 = vpop.f32.mrf.mxu0
    %v237 = vadd.f32 %v147, %v236
    %v238 = vpop.f32.mrf.mxu0
    %239 = vdwg.mxu0
    %v240 = vsel %vm154, %v232, -inf
    %v241 = vsel %vm154, %v237, -inf
    %v242 = vmax.f32 %v240, %v241
    %v243 = vrot.slane %v242, 4
    %v244 = vmax.f32 %v242, %v243
    %v245 = vrot.slane %v244, 2
    %v246 = vmax.f32 %v244, %v245
    %v247 = vrot.slane %v246, 1
    %v248 = vmax.f32 %v246, %v247
    %v249 = vsub.f32 %v232, %v248
    %v250 = vsub.f32 %v237, %v248
    %v251 = vmul.f32 %v249, 1.442695
    %v252 = vpow.pop %v251
    %v253 = vmul.f32 %v250, 1.442695
    %v254 = vpow.pop %v253
    %v255 = vsel %vm154, %v252, 0.0
    %v256 = vsel %vm154, %v254, 0.0
    %v257 = vadd.f32 %v255, %v256
    %v258 = vrot.slane %v257, 4
    %v259 = vadd.f32 %v257, %v258
    %v260 = vrot.slane %v259, 2
    %v261 = vadd.f32 %v259, %v260
    %v262 = vrot.slane %v261, 1
    %v263 = vadd.f32 %v261, %v262
    %v264 = vrcp.pop %v263
    %v265 = vmul.f32 %v252, %v264
    %v266 = vmul.f32 %v254, %v264
    %267 = vrot.lane.b32.xlu0 %v136, 96
    %v268 = vpop.permute.xlu0 %267
    %269 = vrot.lane.b32.xlu0 %v141, 96
    %v270 = vpop.permute.xlu0 %269
    %v274 = vsel %vm154, %v265, 0
    %v277 = vsel %vm154, %v266, 0
    %279 = vmatprep.subr.mxu0 0.0
    %280 = vmatpush1.msra.mxu0 0.0
    %281 = vmatprep.subr.mxu0 0.0
    %282 = vmatpush1.msra.mxu0 0.0
    %283 = vmatprep.subr.mxu0 0.0
    %284 = vmatpush1.msra.mxu0 0.0
    %285 = vmatprep.subr.mxu0 0.0
    %286 = vmatpush1.msra.mxu0 0.0
    %287 = vmatprep.subr.mxu0 0.0
    %288 = vmatpush1.msra.mxu0 0.0
    %289 = vmatprep.subr.mxu0 0.0
    %290 = vmatpush1.msra.mxu0 0.0
    %291 = vmatprep.subr.mxu0 0.0
    %292 = vmatpush1.msra.mxu0 0.0
    %293 = vmatprep.subr.mxu0 0.0
    %294 = vmatpush1.msra.mxu0 0.0
    %295 = vmatprep.subr.mxu0 0.0
    %296 = vmatpush1.msra.mxu0 0.0
    %297 = vmatprep.subr.mxu0 0.0
    %298 = vmatpush1.msra.mxu0 0.0
    %299 = vmatprep.subr.mxu0 0.0
    %300 = vmatpush1.msra.mxu0 0.0
    %301 = vmatprep.subr.mxu0 0.0
    %302 = vmatpush1.msra.mxu0 0.0
    %303 = vmatprep.subr.mxu0 0.0
    %304 = vmatpush1.msra.mxu0 0.0
    %305 = vmatprep.subr.mxu0 0.0
    %306 = vmatpush1.msra.mxu0 0.0
    %307 = vmatprep.subr.mxu0 0.0
    %308 = vmatpush1.msra.mxu0 %v270
    %309 = vmatprep.subr.mxu0 0.0
    %310 = vmatpush1.msra.mxu0 %v268
    %311 = vmatprep.subr.mxu0 0.0
    %312 = vmatpush2.msra.mxu0 0.0
    %313 = vmatprep.subr.mxu0 0.0
    %314 = vmatpush2.msra.mxu0 0.0
    %315 = vmatprep.subr.mxu0 0.0
    %316 = vmatpush2.msra.mxu0 0.0
    %317 = vmatprep.subr.mxu0 0.0
    %318 = vmatpush2.msra.mxu0 0.0
    %319 = vmatprep.subr.mxu0 0.0
    %320 = vmatpush2.msra.mxu0 0.0
    %321 = vmatprep.subr.mxu0 0.0
    %322 = vmatpush2.msra.mxu0 0.0
    %323 = vmatprep.subr.mxu0 0.0
    %324 = vmatpush2.msra.mxu0 0.0
    %325 = vmatprep.subr.mxu0 0.0
    %326 = vmatpush2.msra.mxu0 0.0
    %327 = vmatprep.subr.mxu0 0.0
    %328 = vmatpush2.msra.mxu0 0.0
    %329 = vmatprep.subr.mxu0 0.0
    %330 = vmatpush2.msra.mxu0 0.0
    %331 = vmatprep.subr.mxu0 0.0
    %332 = vmatpush2.msra.mxu0 0.0
    %333 = vmatprep.subr.mxu0 0.0
    %334 = vmatpush2.msra.mxu0 0.0
    %335 = vmatprep.subr.mxu0 0.0
    %336 = vmatpush2.msra.mxu0 0.0
    %337 = vmatprep.subr.mxu0 0.0
    %338 = vmatpush2.msra.mxu0 0.0
    %339 = vmatprep.subr.mxu0 0.0
    %340 = vmatpush2.msra.mxu0 0.0
    %341 = vmatprep.subr.mxu0 0.0
    %342 = vmatpush2.msra.mxu0 0.0
    %343 = vmatprep.mubr.f32.mxu0 0.0
    %344 = vmatmul.mubr.f32.gmra.mxu0 %v274
    %v345 = vpop.f32.mrf.mxu0
    %v346 = vadd.f32 0.0, %v345
    %v347 = vpop.f32.mrf.mxu0
    %348 = vmatprep.mubr.f32.mxu0 0.0
    %349 = vmatmul.mubr.f32.gmra.mxu0 %v277
    %v350 = vpop.f32.mrf.mxu0
    %v351 = vadd.f32 0.0, %v350
    %v352 = vpop.f32.mrf.mxu0
    %353 = vdwg.mxu0
    %354 = vst.msk [vmem:[#allocation8] sm:$0xff] %vm154, %v346
    %355 = vst.msk [vmem:[#allocation8 + $0x8] sm:$0xff] %vm154, %v351
    // Predicated region
    $region26: #{tpu_custom_call.1} parent=1 // pred_check
      _
    $region27: #{tpu_custom_call.1} parent=1 // pred_check_branch
      %357 = sbr.rel (0) target = $region29
    $region28: #{tpu_custom_call.1} parent=1 // pred_region
      %s359 = ssub.s32 256, 256
      %360 = vsyncadd [#allocation4], %s359
      %s361 = sshll.u32 [#allocation8], 4
      %s362 = int_to_ptr.vmem [resolvable:$true] %s361
      %367 = dma.vmem_to_hbm [thread:$0]  %s362, 256, %s3, [#allocation4], 128, 128, 8
    $region29: #{tpu_custom_call.1} parent=1 // pred_fallthru
      _
    // Predicated region
    $region30: #{tpu_custom_call.1} parent=1 // pred_check
      _
    $region31: #{tpu_custom_call.1} parent=1 // pred_check_branch
      %369 = sbr.rel (0) target = $region33
    $region32: #{tpu_custom_call.1} parent=1 // pred_region
      %370 = dma.done [#allocation4], 256
    $region33: #{tpu_custom_call.1} parent=1 // pred_fallthru
      _
    %371 = vsyncpa [#allocation3], 1
    %372 = vsyncpa [#allocation6], 1
    %373 = vsyncpa [#allocation4], 1

</llo_original>
